<compile_context>
chip_gen: v7x
topology: tpu7x:2x2x1
jax: 0.10.0
libtpu: 0.0.40
codegen_flags: <defaults>
</compile_context>

<pallas_src>
import math
import inspect
import functools

import jax
import jax.numpy as jnp
from jax import lax
from jax.experimental import pallas as pl
from jax.experimental.pallas import tpu as pltpu


def _pipeline_mode_supported() -> bool:
    """One-time capability check for pl.BlockSpec(pipeline_mode=...)."""
    try:
        return hasattr(pl, "Buffered") and (
            "pipeline_mode" in inspect.signature(pl.BlockSpec).parameters)
    except (TypeError, ValueError):
        return False


def mha_kernel(x_ref, wqkv_ref, bqkv_ref, wout_ref, bout_ref, o_ref, *,
               bt, seq_len, heads, head_dim, compute_dtype, approx_reciprocal):
    L, hd = seq_len, head_dim
    D = heads * hd
    M = bt * L

    x = x_ref[...]            # (M, D)   compute_dtype (cast once in the wrapper)
    wqkv = wqkv_ref[...]      # (D, 3D)  compute_dtype, Q-part pre-scaled by 1/sqrt(hd)
    wout = wout_ref[...]      # (D, D)   compute_dtype (pre-transposed)
    bqkv = bqkv_ref[...]      # (1, 3D)  f32 (Q-part pre-scaled)
    bout = bout_ref[...]      # (1, D)   f32

    # --- QKV projection: one MXU matmul with K = D, f32 accumulation, then a
    #     single cast of the intermediate to the matmul compute dtype.
    qkv = jnp.dot(x, wqkv, preferred_element_type=jnp.float32) + bqkv   # (M, 3D) f32
    qkv = qkv.astype(compute_dtype)

    # --- Attention: batch elements fused into the dot_general batch dim (no
    #     Python unroll over bt); small static loop over heads only, so a single
    #     head's (bt, L, L) score tile is live at a time.
    contract_qk = (((2,), (2,)), ((0,), (0,)))   # (bt,L,hd) x (bt,L,hd) -> (bt,L,L)
    contract_pv = (((2,), (1,)), ((0,), (0,)))   # (bt,L,L) x (bt,L,hd) -> (bt,L,hd)

    ctx_heads = []
    for h in range(heads):                       # static, bounded (num_heads)
        c0 = h * hd
        qh = qkv[:, c0:c0 + hd].reshape(bt, L, hd)
        kh = qkv[:, D + c0:D + c0 + hd].reshape(bt, L, hd)
        vh = qkv[:, 2 * D + c0:2 * D + c0 + hd].reshape(bt, L, hd)

        # scores in f32; 1/sqrt(hd) already folded into Wq/bq in the wrapper.
        s = lax.dot_general(qh, kh, contract_qk,
                            preferred_element_type=jnp.float32)        # (bt, L, L)
        s = s - jnp.max(s, axis=-1, keepdims=True)
        p = jnp.exp(s)
        denom = jnp.sum(p, axis=-1, keepdims=True)
        if approx_reciprocal:
            p = p * pl.reciprocal(denom, approx=True)   # EUP slot (perf mode)
        else:
            p = p / denom                               # exact (PyTorch parity)

        ctx = lax.dot_general(p.astype(compute_dtype), vh, contract_pv,
                              preferred_element_type=jnp.float32)       # (bt, L, hd)
        ctx_heads.append(ctx.reshape(M, hd).astype(compute_dtype))

    # --- Gather all heads once, then a single K = D output projection matmul
    #     (full MXU depth on v6e/v7x instead of heads K=head_dim matmuls).
    ctx_all = jnp.concatenate(ctx_heads, axis=-1)                       # (M, D)
    out = jnp.dot(ctx_all, wout, preferred_element_type=jnp.float32) + bout
    o_ref[...] = out.astype(o_ref.dtype)


def mh_attention(x, in_proj_w, in_proj_b, out_proj_w, out_proj_b, *, heads,
                 compute_dtype=jnp.bfloat16, rows_per_step=512,
                 approx_reciprocal=False, single_buffer_weights=False,
                 vmem_limit_bytes=48 * 1024 * 1024):
    """Forward pass of nn.MultiheadAttention(dim, heads, batch_first=True)(x, x, x).

    compute_dtype=bfloat16 (default) gives full-rate MXU on v5e/v6e/v7x with f32
    accumulation and f32 softmax math; use compute_dtype=float32 for strict
    PyTorch-parity checks.
    """
    B, L, D = x.shape
    assert D % heads == 0, "embed_dim must be divisible by num_heads"
    hd = D // heads
    out_dtype = x.dtype

    # --- batch-tile selection: fuse batch elements up to ~rows_per_step rows of
    #     M for the projection matmuls, but keep the grid length >= 2 whenever
    #     possible so both v7x TensorCores get work ("parallel" axis).
    bt = 1
    for cand in range(1, B + 1):
        if B % cand:
            continue
        if cand > 1 and cand * L > rows_per_step:
            continue
        if cand > 1 and B >= 2 and B // cand < 2:
            continue
        bt = cand
    if (bt * L) % 8 != 0 and bt * L != B * L:
        bt = B                       # block sublane dim must be %8 or full extent
    M = bt * L
    grid = (B // bt,)

    # --- one-time parameter prep (wrapper side):
    #     * pre-transpose weights (F.linear computes x @ W^T) so the kernel feeds
    #       the MXU directly,
    #     * fold the 1/sqrt(head_dim) scale into the Q rows of the in-projection,
    #     * cast matmul operands to compute_dtype; biases stay f32,
    #     * collapse x / out to lane-dense (B*L, D) slabs.
    scale = 1.0 / math.sqrt(hd)
    wqkv_t = in_proj_w.at[:D].multiply(scale).T.astype(compute_dtype)      # (D, 3D)
    bqkv = in_proj_b.at[:D].multiply(scale).reshape(1, 3 * D).astype(jnp.float32)
    wout_t = out_proj_w.T.astype(compute_dtype)                            # (D, D)
    bout = out_proj_b.reshape(1, D).astype(jnp.float32)
    x_flat = x.reshape(B * L, D).astype(compute_dtype)

    # Optional single-buffering of the constant-index weight/bias blocks (saves
    # one weight copy of VMEM — most useful on v7x's 64 MiB). Explicit capability
    # check instead of a broad try/except fallback.
    if single_buffer_weights:
        if not _pipeline_mode_supported():
            raise NotImplementedError(
                "single_buffer_weights=True needs pl.BlockSpec(pipeline_mode=...) "
                "support in this jax version")
        const_kw = dict(pipeline_mode=pl.Buffered(1))
    else:
        const_kw = {}

    kernel = functools.partial(
        mha_kernel, bt=bt, seq_len=L, heads=heads, head_dim=hd,
        compute_dtype=compute_dtype, approx_reciprocal=approx_reciprocal)

    cd_bytes = int(jnp.dtype(compute_dtype).itemsize)
    cost = pl.CostEstimate(
        flops=(2 * B * L * D * 3 * D               # QKV projection
               + 2 * B * heads * L * L * hd * 2    # QK^T + PV
               + 2 * B * L * D * D),               # output projection
        transcendentals=B * heads * L * L,         # exp in softmax
        bytes_accessed=(B * L * D * cd_bytes
                        + (D * 3 * D + D * D) * cd_bytes + 4 * (3 * D + D)
                        + B * L * D * int(jnp.dtype(out_dtype).itemsize)),
    )

    out_flat = pl.pallas_call(
        kernel,
        out_shape=jax.ShapeDtypeStruct((B * L, D), out_dtype),
        grid_spec=pltpu.PrefetchScalarGridSpec(
            num_scalar_prefetch=0,
            grid=grid,
            in_specs=[
                pl.BlockSpec((M, D), lambda i: (i, 0)),                  # x slab
                pl.BlockSpec((D, 3 * D), lambda i: (0, 0), **const_kw),  # Wqkv^T
                pl.BlockSpec((1, 3 * D), lambda i: (0, 0), **const_kw),  # bqkv
                pl.BlockSpec((D, D), lambda i: (0, 0), **const_kw),      # Wout^T
                pl.BlockSpec((1, D), lambda i: (0, 0), **const_kw),      # bout
            ],
            out_specs=pl.BlockSpec((M, D), lambda i: (i, 0)),
        ),
        compiler_params=pltpu.CompilerParams(
            dimension_semantics=("parallel",),
            vmem_limit_bytes=vmem_limit_bytes),
        cost_estimate=cost,
    )(x_flat, wqkv_t, bqkv, wout_t, bout)

    return out_flat.reshape(B, L, D)


def mh_attention_ref(x, in_proj_w, in_proj_b, out_proj_w, out_proj_b, *, heads):
    """Pure-JAX reference matching nn.MultiheadAttention forward (no dropout/mask)."""
    B, L, D = x.shape
    hd = D // heads
    qkv = jnp.einsum("bld,ed->ble", x, in_proj_w) + in_proj_b
    q, k, v = jnp.split(qkv, 3, axis=-1)

    def split_heads(t):
        return t.reshape(B, L, heads, hd).transpose(0, 2, 1, 3)  # (B, H, L, hd)

    q, k, v = split_heads(q), split_heads(k), split_heads(v)
    s = jnp.einsum("bhid,bhjd->bhij", q, k) / math.sqrt(hd)
    p = jax.nn.softmax(s, axis=-1)
    ctx = jnp.einsum("bhij,bhjd->bhid", p, v)
    ctx = ctx.transpose(0, 2, 1, 3).reshape(B, L, D)
    return jnp.einsum("bld,ed->ble", ctx, out_proj_w) + out_proj_b


if __name__ == "__main__":
    B, L, dim, heads = 2, 8, 32, 4

    key = jax.random.PRNGKey(0)
    kx, k1, k2, k3, k4 = jax.random.split(key, 5)

    x = jax.random.normal(kx, (B, L, dim), dtype=jnp.float32)

    # Deterministic synthetic parameters (shapes from nn.MultiheadAttention.__init__)
    in_proj_w = jax.random.normal(k1, (3 * dim, dim), dtype=jnp.float32) * (1.0 / math.sqrt(dim))
    in_proj_b = jax.random.normal(k2, (3 * dim,), dtype=jnp.float32) * 0.02
    out_proj_w = jax.random.normal(k3, (dim, dim), dtype=jnp.float32) * (1.0 / math.sqrt(dim))
    out_proj_b = jax.random.normal(k4, (dim,), dtype=jnp.float32) * 0.02

    ref = mh_attention_ref(x, in_proj_w, in_proj_b, out_proj_w, out_proj_b, heads=heads)

    # f32 parity path (exact softmax — closest to PyTorch numerics).
    out_f32 = jax.block_until_ready(
        mh_attention(x, in_proj_w, in_proj_b, out_proj_w, out_proj_b,
                     heads=heads, compute_dtype=jnp.float32))
    assert out_f32.shape == (B, L, dim)
    assert jnp.allclose(out_f32, ref, rtol=2e-3, atol=2e-3), "f32 mismatch vs pure-JAX reference"

    # Default bf16 MXU path (recommended on v5e/v6e/v7x); relaxed tolerance.
    out_bf16 = jax.block_until_ready(
        mh_attention(x, in_proj_w, in_proj_b, out_proj_w, out_proj_b, heads=heads))
    assert out_bf16.shape == (B, L, dim)
    assert jnp.allclose(out_bf16, ref, rtol=5e-2, atol=5e-2), "bf16 mismatch vs pure-JAX reference"

    print("KERNEL_OK")
</pallas_src>

<mosaic_0001>
module attributes {stable_mosaic.version = 11 : i64} {
  func.func @mha_kernel(%arg0: i32, %arg1: memref<8x32xf32, #tpu.memory_space<vmem>>, %arg2: memref<32x96xf32, #tpu.memory_space<vmem>>, %arg3: memref<1x96xf32, #tpu.memory_space<vmem>>, %arg4: memref<32x32xf32, #tpu.memory_space<vmem>>, %arg5: memref<1x32xf32, #tpu.memory_space<vmem>>, %arg6: memref<8x32xf32, #tpu.memory_space<vmem>>) attributes {dimension_semantics = [#tpu.dimension_semantics<parallel>], iteration_bounds = array<i64: 2>, scalar_prefetch = 0 : i64, scratch_operands = 0 : i64, tpu.core_type = #tpu.core_type<tc>, window_params = [{transform_indices = @transform_0, window_bounds = array<i64: 8, 32>}, {pipeline_mode = #tpu.pipeline_mode<synchronous>, transform_indices = @transform_1, window_bounds = array<i64: 32, 96>}, {pipeline_mode = #tpu.pipeline_mode<synchronous>, transform_indices = @transform_2, window_bounds = array<i64: 1, 96>}, {pipeline_mode = #tpu.pipeline_mode<synchronous>, transform_indices = @transform_3, window_bounds = array<i64: 32, 32>}, {pipeline_mode = #tpu.pipeline_mode<synchronous>, transform_indices = @transform_4, window_bounds = array<i64: 1, 32>}, {transform_indices = @transform_5, window_bounds = array<i64: 8, 32>}]} {
    %c0 = arith.constant 0 : index
    %c0_0 = arith.constant 0 : index
    %0 = vector.load %arg1[%c0, %c0_0] : memref<8x32xf32, #tpu.memory_space<vmem>>, vector<8x32xf32>
    %c0_1 = arith.constant 0 : index
    %c0_2 = arith.constant 0 : index
    %1 = vector.load %arg2[%c0_1, %c0_2] : memref<32x96xf32, #tpu.memory_space<vmem>>, vector<32x96xf32>
    %c0_3 = arith.constant 0 : index
    %c0_4 = arith.constant 0 : index
    %2 = vector.load %arg4[%c0_3, %c0_4] : memref<32x32xf32, #tpu.memory_space<vmem>>, vector<32x32xf32>
    %c0_5 = arith.constant 0 : index
    %c0_6 = arith.constant 0 : index
    %3 = vector.load %arg3[%c0_5, %c0_6] : memref<1x96xf32, #tpu.memory_space<vmem>>, vector<1x96xf32>
    %c0_7 = arith.constant 0 : index
    %c0_8 = arith.constant 0 : index
    %4 = vector.load %arg5[%c0_7, %c0_8] : memref<1x32xf32, #tpu.memory_space<vmem>>, vector<1x32xf32>
    %cst = arith.constant dense<0.000000e+00> : vector<8x96xf32>
    %5 = tpu.matmul %0, %1, %cst {dimension_numbers = #tpu.dot_dimension_numbers<[1], [0], [0], [1], [0, 0, 1, 1], [], []>} : vector<8x32xf32>, vector<32x96xf32>, vector<8x96xf32> -> vector<8x96xf32>
    %6 = vector.broadcast %3 : vector<1x96xf32> to vector<8x96xf32>
    %7 = arith.addf %5, %6 : vector<8x96xf32>
    %8 = vector.extract_strided_slice %7 {offsets = [0, 0], sizes = [8, 8], strides = [1, 1]} : vector<8x96xf32> to vector<8x8xf32>
    %9 = vector.shape_cast %8 : vector<8x8xf32> to vector<1x8x8xf32>
    %10 = vector.extract_strided_slice %7 {offsets = [0, 32], sizes = [8, 8], strides = [1, 1]} : vector<8x96xf32> to vector<8x8xf32>
    %11 = vector.shape_cast %10 : vector<8x8xf32> to vector<1x8x8xf32>
    %12 = vector.extract_strided_slice %7 {offsets = [0, 64], sizes = [8, 8], strides = [1, 1]} : vector<8x96xf32> to vector<8x8xf32>
    %13 = vector.shape_cast %12 : vector<8x8xf32> to vector<1x8x8xf32>
    %cst_9 = arith.constant dense<0.000000e+00> : vector<1x8x8xf32>
    %14 = tpu.matmul %9, %11, %cst_9 {dimension_numbers = #tpu.dot_dimension_numbers<[2], [2], [1], [1], [0, 0, 0, 1, 1, 1], [0], [0]>} : vector<1x8x8xf32>, vector<1x8x8xf32>, vector<1x8x8xf32> -> vector<1x8x8xf32>
    %cst_10 = arith.constant dense<0xFF800000> : vector<1x8xf32>
    %15 = vector.multi_reduction <maximumf>, %14, %cst_10 [2] : vector<1x8x8xf32> to vector<1x8xf32>
    %16 = vector.shape_cast %15 : vector<1x8xf32> to vector<1x8x1xf32>
    %17 = vector.broadcast %16 : vector<1x8x1xf32> to vector<1x8x8xf32>
    %18 = arith.subf %14, %17 : vector<1x8x8xf32>
    %19 = math.exp %18 : vector<1x8x8xf32>
    %cst_11 = arith.constant dense<0.000000e+00> : vector<1x8xf32>
    %20 = vector.multi_reduction <add>, %19, %cst_11 [2] : vector<1x8x8xf32> to vector<1x8xf32>
    %21 = vector.shape_cast %20 : vector<1x8xf32> to vector<1x8x1xf32>
    %22 = vector.broadcast %21 : vector<1x8x1xf32> to vector<1x8x8xf32>
    %23 = arith.divf %19, %22 : vector<1x8x8xf32>
    %cst_12 = arith.constant dense<0.000000e+00> : vector<1x8x8xf32>
    %24 = tpu.matmul %23, %13, %cst_12 {dimension_numbers = #tpu.dot_dimension_numbers<[2], [1], [1], [2], [0, 0, 0, 1, 1, 2], [0], [0]>} : vector<1x8x8xf32>, vector<1x8x8xf32>, vector<1x8x8xf32> -> vector<1x8x8xf32>
    %25 = vector.shape_cast %24 : vector<1x8x8xf32> to vector<8x8xf32>
    %26 = vector.extract_strided_slice %7 {offsets = [0, 8], sizes = [8, 8], strides = [1, 1]} : vector<8x96xf32> to vector<8x8xf32>
    %27 = vector.shape_cast %26 : vector<8x8xf32> to vector<1x8x8xf32>
    %28 = vector.extract_strided_slice %7 {offsets = [0, 40], sizes = [8, 8], strides = [1, 1]} : vector<8x96xf32> to vector<8x8xf32>
    %29 = vector.shape_cast %28 : vector<8x8xf32> to vector<1x8x8xf32>
    %30 = vector.extract_strided_slice %7 {offsets = [0, 72], sizes = [8, 8], strides = [1, 1]} : vector<8x96xf32> to vector<8x8xf32>
    %31 = vector.shape_cast %30 : vector<8x8xf32> to vector<1x8x8xf32>
    %cst_13 = arith.constant dense<0.000000e+00> : vector<1x8x8xf32>
    %32 = tpu.matmul %27, %29, %cst_13 {dimension_numbers = #tpu.dot_dimension_numbers<[2], [2], [1], [1], [0, 0, 0, 1, 1, 1], [0], [0]>} : vector<1x8x8xf32>, vector<1x8x8xf32>, vector<1x8x8xf32> -> vector<1x8x8xf32>
    %cst_14 = arith.constant dense<0xFF800000> : vector<1x8xf32>
    %33 = vector.multi_reduction <maximumf>, %32, %cst_14 [2] : vector<1x8x8xf32> to vector<1x8xf32>
    %34 = vector.shape_cast %33 : vector<1x8xf32> to vector<1x8x1xf32>
    %35 = vector.broadcast %34 : vector<1x8x1xf32> to vector<1x8x8xf32>
    %36 = arith.subf %32, %35 : vector<1x8x8xf32>
    %37 = math.exp %36 : vector<1x8x8xf32>
    %cst_15 = arith.constant dense<0.000000e+00> : vector<1x8xf32>
    %38 = vector.multi_reduction <add>, %37, %cst_15 [2] : vector<1x8x8xf32> to vector<1x8xf32>
    %39 = vector.shape_cast %38 : vector<1x8xf32> to vector<1x8x1xf32>
    %40 = vector.broadcast %39 : vector<1x8x1xf32> to vector<1x8x8xf32>
    %41 = arith.divf %37, %40 : vector<1x8x8xf32>
    %cst_16 = arith.constant dense<0.000000e+00> : vector<1x8x8xf32>
    %42 = tpu.matmul %41, %31, %cst_16 {dimension_numbers = #tpu.dot_dimension_numbers<[2], [1], [1], [2], [0, 0, 0, 1, 1, 2], [0], [0]>} : vector<1x8x8xf32>, vector<1x8x8xf32>, vector<1x8x8xf32> -> vector<1x8x8xf32>
    %43 = vector.shape_cast %42 : vector<1x8x8xf32> to vector<8x8xf32>
    %44 = vector.extract_strided_slice %7 {offsets = [0, 16], sizes = [8, 8], strides = [1, 1]} : vector<8x96xf32> to vector<8x8xf32>
    %45 = vector.shape_cast %44 : vector<8x8xf32> to vector<1x8x8xf32>
    %46 = vector.extract_strided_slice %7 {offsets = [0, 48], sizes = [8, 8], strides = [1, 1]} : vector<8x96xf32> to vector<8x8xf32>
    %47 = vector.shape_cast %46 : vector<8x8xf32> to vector<1x8x8xf32>
    %48 = vector.extract_strided_slice %7 {offsets = [0, 80], sizes = [8, 8], strides = [1, 1]} : vector<8x96xf32> to vector<8x8xf32>
    %49 = vector.shape_cast %48 : vector<8x8xf32> to vector<1x8x8xf32>
    %cst_17 = arith.constant dense<0.000000e+00> : vector<1x8x8xf32>
    %50 = tpu.matmul %45, %47, %cst_17 {dimension_numbers = #tpu.dot_dimension_numbers<[2], [2], [1], [1], [0, 0, 0, 1, 1, 1], [0], [0]>} : vector<1x8x8xf32>, vector<1x8x8xf32>, vector<1x8x8xf32> -> vector<1x8x8xf32>
    %cst_18 = arith.constant dense<0xFF800000> : vector<1x8xf32>
    %51 = vector.multi_reduction <maximumf>, %50, %cst_18 [2] : vector<1x8x8xf32> to vector<1x8xf32>
    %52 = vector.shape_cast %51 : vector<1x8xf32> to vector<1x8x1xf32>
    %53 = vector.broadcast %52 : vector<1x8x1xf32> to vector<1x8x8xf32>
    %54 = arith.subf %50, %53 : vector<1x8x8xf32>
    %55 = math.exp %54 : vector<1x8x8xf32>
    %cst_19 = arith.constant dense<0.000000e+00> : vector<1x8xf32>
    %56 = vector.multi_reduction <add>, %55, %cst_19 [2] : vector<1x8x8xf32> to vector<1x8xf32>
    %57 = vector.shape_cast %56 : vector<1x8xf32> to vector<1x8x1xf32>
    %58 = vector.broadcast %57 : vector<1x8x1xf32> to vector<1x8x8xf32>
    %59 = arith.divf %55, %58 : vector<1x8x8xf32>
    %cst_20 = arith.constant dense<0.000000e+00> : vector<1x8x8xf32>
    %60 = tpu.matmul %59, %49, %cst_20 {dimension_numbers = #tpu.dot_dimension_numbers<[2], [1], [1], [2], [0, 0, 0, 1, 1, 2], [0], [0]>} : vector<1x8x8xf32>, vector<1x8x8xf32>, vector<1x8x8xf32> -> vector<1x8x8xf32>
    %61 = vector.shape_cast %60 : vector<1x8x8xf32> to vector<8x8xf32>
    %62 = vector.extract_strided_slice %7 {offsets = [0, 24], sizes = [8, 8], strides = [1, 1]} : vector<8x96xf32> to vector<8x8xf32>
    %63 = vector.shape_cast %62 : vector<8x8xf32> to vector<1x8x8xf32>
    %64 = vector.extract_strided_slice %7 {offsets = [0, 56], sizes = [8, 8], strides = [1, 1]} : vector<8x96xf32> to vector<8x8xf32>
    %65 = vector.shape_cast %64 : vector<8x8xf32> to vector<1x8x8xf32>
    %66 = vector.extract_strided_slice %7 {offsets = [0, 88], sizes = [8, 8], strides = [1, 1]} : vector<8x96xf32> to vector<8x8xf32>
    %67 = vector.shape_cast %66 : vector<8x8xf32> to vector<1x8x8xf32>
    %cst_21 = arith.constant dense<0.000000e+00> : vector<1x8x8xf32>
    %68 = tpu.matmul %63, %65, %cst_21 {dimension_numbers = #tpu.dot_dimension_numbers<[2], [2], [1], [1], [0, 0, 0, 1, 1, 1], [0], [0]>} : vector<1x8x8xf32>, vector<1x8x8xf32>, vector<1x8x8xf32> -> vector<1x8x8xf32>
    %cst_22 = arith.constant dense<0xFF800000> : vector<1x8xf32>
    %69 = vector.multi_reduction <maximumf>, %68, %cst_22 [2] : vector<1x8x8xf32> to vector<1x8xf32>
    %70 = vector.shape_cast %69 : vector<1x8xf32> to vector<1x8x1xf32>
    %71 = vector.broadcast %70 : vector<1x8x1xf32> to vector<1x8x8xf32>
    %72 = arith.subf %68, %71 : vector<1x8x8xf32>
    %73 = math.exp %72 : vector<1x8x8xf32>
    %cst_23 = arith.constant dense<0.000000e+00> : vector<1x8xf32>
    %74 = vector.multi_reduction <add>, %73, %cst_23 [2] : vector<1x8x8xf32> to vector<1x8xf32>
    %75 = vector.shape_cast %74 : vector<1x8xf32> to vector<1x8x1xf32>
    %76 = vector.broadcast %75 : vector<1x8x1xf32> to vector<1x8x8xf32>
    %77 = arith.divf %73, %76 : vector<1x8x8xf32>
    %cst_24 = arith.constant dense<0.000000e+00> : vector<1x8x8xf32>
    %78 = tpu.matmul %77, %67, %cst_24 {dimension_numbers = #tpu.dot_dimension_numbers<[2], [1], [1], [2], [0, 0, 0, 1, 1, 2], [0], [0]>} : vector<1x8x8xf32>, vector<1x8x8xf32>, vector<1x8x8xf32> -> vector<1x8x8xf32>
    %79 = vector.shape_cast %78 : vector<1x8x8xf32> to vector<8x8xf32>
    %80 = tpu.concatenate %25, %43, %61, %79 in 1 : vector<8x8xf32>, vector<8x8xf32>, vector<8x8xf32>, vector<8x8xf32> -> vector<8x32xf32>
    %cst_25 = arith.constant dense<0.000000e+00> : vector<8x32xf32>
    %81 = tpu.matmul %80, %2, %cst_25 {dimension_numbers = #tpu.dot_dimension_numbers<[1], [0], [0], [1], [0, 0, 1, 1], [], []>} : vector<8x32xf32>, vector<32x32xf32>, vector<8x32xf32> -> vector<8x32xf32>
    %82 = vector.broadcast %4 : vector<1x32xf32> to vector<8x32xf32>
    %83 = arith.addf %81, %82 : vector<8x32xf32>
    %c0_26 = arith.constant 0 : index
    %c0_27 = arith.constant 0 : index
    %84 = vector.load %arg6[%c0_26, %c0_27] : memref<8x32xf32, #tpu.memory_space<vmem>>, vector<8x32xf32>
    tpu.vector_store %arg6[%c0_26, %c0_27], %83 {strides = array<i32>} : memref<8x32xf32, #tpu.memory_space<vmem>>, vector<8x32xf32>,
    return
  }
  func.func @transform_0(%arg0: i32) -> (i32, i32) {
    %c0_i32 = arith.constant 0 : i32
    %c0_i32_0 = arith.constant 0 : i32
    return %arg0, %c0_i32 : i32, i32
  }
  func.func @transform_1(%arg0: i32) -> (i32, i32) {
    %c0_i32 = arith.constant 0 : i32
    %c0_i32_0 = arith.constant 0 : i32
    %c0_i32_1 = arith.constant 0 : i32
    return %c0_i32, %c0_i32_0 : i32, i32
  }
  func.func @transform_2(%arg0: i32) -> (i32, i32) {
    %c0_i32 = arith.constant 0 : i32
    %c0_i32_0 = arith.constant 0 : i32
    %c0_i32_1 = arith.constant 0 : i32
    return %c0_i32, %c0_i32_0 : i32, i32
  }
  func.func @transform_3(%arg0: i32) -> (i32, i32) {
    %c0_i32 = arith.constant 0 : i32
    %c0_i32_0 = arith.constant 0 : i32
    %c0_i32_1 = arith.constant 0 : i32
    return %c0_i32, %c0_i32_0 : i32, i32
  }
  func.func @transform_4(%arg0: i32) -> (i32, i32) {
    %c0_i32 = arith.constant 0 : i32
    %c0_i32_0 = arith.constant 0 : i32
    %c0_i32_1 = arith.constant 0 : i32
    return %c0_i32, %c0_i32_0 : i32, i32
  }
  func.func @transform_5(%arg0: i32) -> (i32, i32) {
    %c0_i32 = arith.constant 0 : i32
    %c0_i32_0 = arith.constant 0 : i32
    return %arg0, %c0_i32 : i32, i32
  }
}

</mosaic_0001>

<llo_original>
// kernel: tpu_custom_call.1
$region0: #{tpu_custom_call.1}
  #allocation0 [shape = 'u32[]', space=smem, size = 0x4, offset = 0x4, fixed_abs, tag = 'smem constant byte address 0x4 - core index']
  #allocation1 [shape = 'u32[144,128]{1,0:T(1,128)}', space=vmem, size = 0x12000, scoped, tag = 'internal scratch']
  %s0 = inlined_call_operand.hbm [shape: f32[16,32], index: 0, kind: input, shape index: {}]
  %s1 = inlined_call_operand.hbm [shape: f32[32,96], index: 1, kind: input, shape index: {}]
  %s2 = inlined_call_operand.vmem [shape: f32[1,96], index: 2, kind: input, shape index: {}]
  %s3 = inlined_call_operand.hbm [shape: f32[32,32], index: 3, kind: input, shape index: {}]
  %s4 = inlined_call_operand.vmem [shape: f32[1,32], index: 4, kind: input, shape index: {}]
  %s5 = inlined_call_operand.hbm [shape: f32[16,32], index: 5, kind: output, shape index: {}]
  %s6 = sld [smem:[#allocation0]]
  $region65: #{tpu_custom_call.1} parent=0
    _
  %s8 = ssub.s32 1, %s6
  %s9 = scalar_select 0, %s8, %s6
  $region1: #{tpu_custom_call.1} parent=0
    #allocation2 [shape = 'u8[8192]{0}', space=vmem, size = 0x2000, scoped, tag = 'input window, operand 0']
    #allocation3 [shape = 's32[2]{0}', space=sflag, size = 0x8, scoped, tag = 'scoped memory for tpu_custom_call.1']
    #allocation4 [shape = 's32[2]{0}', space=sflag, size = 0x8, scoped, tag = 'scoped memory for tpu_custom_call.1']
    #allocation5 [shape = 'u8[16384]{0}', space=vmem, size = 0x4000, scoped, tag = 'input window, operand 1, single buffered']
    #allocation6 [shape = 's32[1]{0}', space=sflag, size = 0x4, scoped, tag = 'scoped memory for tpu_custom_call.1']
    #allocation7 [shape = 'u8[16384]{0}', space=vmem, size = 0x4000, scoped, tag = 'input window, operand 3, single buffered']
    #allocation8 [shape = 'u8[8192]{0}', space=vmem, size = 0x2000, scoped, tag = 'output window, operand 0']
    %10 = vsyncpa [#allocation3], 0
    %s11 = scalar_lea.sflag [#allocation3], 1
    %12 = vsyncpa %s11, 0
    %13 = vsyncpa [#allocation6], 0
    %14 = vsyncpa [#allocation4], 0
    %s15 = scalar_lea.sflag [#allocation4], 1
    %16 = vsyncpa %s15, 0
    loop: start=0, step=1, limit=4
    $region2: #{tpu_custom_call.1} parent=1 // loop_pre_header
      _
    $region3: #{tpu_custom_call.1} parent=1 // loop_header
      %s18 = sphi 0, %s22
      %p19 = scmp.ge.s32.totalorder %s18, 4
      %s28 = sphi 0, %s30
      %s31 = sphi 0, %s28
      %s32 = sphi 0, %s31
      %s48 = sphi 0, %s32
      %s52 = sphi 0, %s52
      %s54 = sphi 0, %s52
      %s55 = sphi 0, %s54
      %s69 = sphi 0, %s55
      %s73 = sphi 0, %s73
      %s75 = sphi 0, %s73
      %s76 = sphi 0, %s75
      %s90 = sphi 0, %s76
      %s94 = sphi 0, %s94
      %s96 = sphi 0, %s94
      %s97 = sphi 0, %s96
      %s111 = sphi 0, %s97
      %s115 = sphi 0, %s115
      %s117 = sphi 0, %s115
      %s118 = sphi 0, %s117
      %s132 = sphi 0, %s118
      %s138 = sphi 0, %s140
      %s141 = sphi 0, %s138
      %s142 = sphi 0, %s141
      %s158 = sphi 0, %s142
    $region4: #{tpu_custom_call.1} parent=1 // loop_header_branch
      %21 = sbr.rel (%p19) target = $region8
    $region5: #{tpu_custom_call.1} parent=1 // loop_body
      %s23 = ssub.s32 %s18, 1
      %s24 = ssub.s32 %s18, 2
      %s25 = sadd.s32 %s18, 1
      %s26 = ssub.s32 %s18, %s25
      %p27 = scmp.eq.s32.totalorder %s26, 0
      %s29 = sadd.s32 %s28, 1
      %s30 = scalar_select %p27, %s28, %s29
      %p33 = pneg %p27
      %p34 = scmp.eq.s32.totalorder %s18, 1
      %p35 = por %p33, %p34
      %p36 = scmp.ne.s32.totalorder %s28, %s31
      %p37 = scmp.eq.s32.totalorder %s18, 0
      %p38 = por %p36, %p37
      %p39 = scmp.ne.s32.totalorder %s28, %s31
      %p40 = scmp.eq.s32.totalorder %s23, 1
      %p41 = por %p39, %p40
      %p42 = scmp.ne.s32.totalorder %s31, %s32
      %p43 = scmp.eq.s32.totalorder %s23, 0
      %p44 = por %p42, %p43
      %p45 = scmp.ne.s32.totalorder %s31, %s32
      %p46 = scmp.eq.s32.totalorder %s24, 1
      %p47 = por %p45, %p46
      %p49 = scmp.ne.s32.totalorder %s32, %s48
      %p50 = scmp.eq.s32.totalorder %s24, 0
      %p51 = por %p49, %p50
      %s53 = sadd.s32 %s52, 1
      %p56 = scmp.eq.s32.totalorder %s18, 1
      %p57 = scmp.ne.s32.totalorder %s52, %s54
      %p58 = scmp.eq.s32.totalorder %s18, 0
      %p59 = por %p57, %p58
      %p60 = scmp.ne.s32.totalorder %s52, %s54
      %p61 = scmp.eq.s32.totalorder %s23, 1
      %p62 = por %p60, %p61
      %p63 = scmp.ne.s32.totalorder %s54, %s55
      %p64 = scmp.eq.s32.totalorder %s23, 0
      %p65 = por %p63, %p64
      %p66 = scmp.ne.s32.totalorder %s54, %s55
      %p67 = scmp.eq.s32.totalorder %s24, 1
      %p68 = por %p66, %p67
      %p70 = scmp.ne.s32.totalorder %s55, %s69
      %p71 = scmp.eq.s32.totalorder %s24, 0
      %p72 = por %p70, %p71
      %s74 = sadd.s32 %s73, 1
      %p77 = scmp.eq.s32.totalorder %s18, 1
      %p78 = scmp.ne.s32.totalorder %s73, %s75
      %p79 = scmp.eq.s32.totalorder %s18, 0
      %p80 = por %p78, %p79
      %p81 = scmp.ne.s32.totalorder %s73, %s75
      %p82 = scmp.eq.s32.totalorder %s23, 1
      %p83 = por %p81, %p82
      %p84 = scmp.ne.s32.totalorder %s75, %s76
      %p85 = scmp.eq.s32.totalorder %s23, 0
      %p86 = por %p84, %p85
      %p87 = scmp.ne.s32.totalorder %s75, %s76
      %p88 = scmp.eq.s32.totalorder %s24, 1
      %p89 = por %p87, %p88
      %p91 = scmp.ne.s32.totalorder %s76, %s90
      %p92 = scmp.eq.s32.totalorder %s24, 0
      %p93 = por %p91, %p92
      %s95 = sadd.s32 %s94, 1
      %p98 = scmp.eq.s32.totalorder %s18, 1
      %p99 = scmp.ne.s32.totalorder %s94, %s96
      %p100 = scmp.eq.s32.totalorder %s18, 0
      %p101 = por %p99, %p100
      %p102 = scmp.ne.s32.totalorder %s94, %s96
      %p103 = scmp.eq.s32.totalorder %s23, 1
      %p104 = por %p102, %p103
      %p105 = scmp.ne.s32.totalorder %s96, %s97
      %p106 = scmp.eq.s32.totalorder %s23, 0
      %p107 = por %p105, %p106
      %p108 = scmp.ne.s32.totalorder %s96, %s97
      %p109 = scmp.eq.s32.totalorder %s24, 1
      %p110 = por %p108, %p109
      %p112 = scmp.ne.s32.totalorder %s97, %s111
      %p113 = scmp.eq.s32.totalorder %s24, 0
      %p114 = por %p112, %p113
      %s116 = sadd.s32 %s115, 1
      %p119 = scmp.eq.s32.totalorder %s18, 1
      %p120 = scmp.ne.s32.totalorder %s115, %s117
      %p121 = scmp.eq.s32.totalorder %s18, 0
      %p122 = por %p120, %p121
      %p123 = scmp.ne.s32.totalorder %s115, %s117
      %p124 = scmp.eq.s32.totalorder %s23, 1
      %p125 = por %p123, %p124
      %p126 = scmp.ne.s32.totalorder %s117, %s118
      %p127 = scmp.eq.s32.totalorder %s23, 0
      %p128 = por %p126, %p127
      %p129 = scmp.ne.s32.totalorder %s117, %s118
      %p130 = scmp.eq.s32.totalorder %s24, 1
      %p131 = por %p129, %p130
      %p133 = scmp.ne.s32.totalorder %s118, %s132
      %p134 = scmp.eq.s32.totalorder %s24, 0
      %p135 = por %p133, %p134
      %s136 = ssub.s32 %s18, %s25
      %p137 = scmp.eq.s32.totalorder %s136, 0
      %s139 = sadd.s32 %s138, 1
      %s140 = scalar_select %p137, %s138, %s139
      %p143 = pneg %p137
      %p144 = scmp.eq.s32.totalorder %s18, 1
      %p145 = por %p143, %p144
      %p146 = scmp.ne.s32.totalorder %s138, %s141
      %p147 = scmp.eq.s32.totalorder %s18, 0
      %p148 = por %p146, %p147
      %p149 = scmp.ne.s32.totalorder %s138, %s141
      %p150 = scmp.eq.s32.totalorder %s23, 1
      %p151 = por %p149, %p150
      %p152 = scmp.ne.s32.totalorder %s141, %s142
      %p153 = scmp.eq.s32.totalorder %s23, 0
      %p154 = por %p152, %p153
      %p155 = scmp.ne.s32.totalorder %s141, %s142
      %p156 = scmp.eq.s32.totalorder %s24, 1
      %p157 = por %p155, %p156
      %p159 = scmp.ne.s32.totalorder %s142, %s158
      %p160 = scmp.eq.s32.totalorder %s24, 0
      %p161 = por %p159, %p160
      %p162 = scmp.le.s32.totalorder 1, %s18
      %p163 = scmp.lt.s32.totalorder %s18, 3
      %p164 = pnand %p162, %p163
      %p165 = pneg %p164
      // Predicated region
      $region9: #{tpu_custom_call.1} parent=5 // pred_check
        _
      $region10: #{tpu_custom_call.1} parent=5 // pred_check_branch
        %167 = sbr.rel (%p164) target = $region12
      $region11: #{tpu_custom_call.1} parent=5 // pred_region
        %s168 = ssub.s32 %s18, 1
        // Predicated region
        $region13: #{tpu_custom_call.1} parent=11 // pred_check
          %p169 = pneg %p65
        $region14: #{tpu_custom_call.1} parent=11 // pred_check_branch
          %171 = sbr.rel (%p169) target = $region16
        $region15: #{tpu_custom_call.1} parent=11 // pred_region
          %s173 = ssub.s32 512, 512
          %174 = vsyncadd [#allocation6], %s173
          %s175 = sshll.u32 [#allocation5], 4
          %s176 = int_to_ptr.vmem [resolvable:$true] %s175
          %181 = dma.hbm_to_vmem [thread:$0]  %s1, 512, %s176, [#allocation6], 128, 128, 8
        $region16: #{tpu_custom_call.1} parent=11 // pred_fallthru
          _
        // Predicated region
        $region17: #{tpu_custom_call.1} parent=11 // pred_check
          %p182 = pneg %p86
        $region18: #{tpu_custom_call.1} parent=11 // pred_check_branch
          %184 = sbr.rel (%p182) target = $region20
        $region19: #{tpu_custom_call.1} parent=11 // pred_region
          _
        $region20: #{tpu_custom_call.1} parent=11 // pred_fallthru
          _
        // Predicated region
        $region21: #{tpu_custom_call.1} parent=11 // pred_check
          %p185 = pneg %p107
        $region22: #{tpu_custom_call.1} parent=11 // pred_check_branch
          %187 = sbr.rel (%p185) target = $region24
        $region23: #{tpu_custom_call.1} parent=11 // pred_region
          %s189 = ssub.s32 512, 512
          %190 = vsyncadd [#allocation6], %s189
          %s191 = sshll.u32 [#allocation7], 4
          %s192 = int_to_ptr.vmem [resolvable:$true] %s191
          %197 = dma.hbm_to_vmem [thread:$0]  %s3, 512, %s192, [#allocation6], 128, 128, 8
        $region24: #{tpu_custom_call.1} parent=11 // pred_fallthru
          _
        // Predicated region
        $region25: #{tpu_custom_call.1} parent=11 // pred_check
          %p198 = pneg %p128
        $region26: #{tpu_custom_call.1} parent=11 // pred_check_branch
          %200 = sbr.rel (%p198) target = $region28
        $region27: #{tpu_custom_call.1} parent=11 // pred_region
          _
        $region28: #{tpu_custom_call.1} parent=11 // pred_fallthru
          _
      $region12: #{tpu_custom_call.1} parent=5 // pred_fallthru
        _
      %p201 = scmp.lt.s32.totalorder %s18, 2
      // Predicated region
      $region29: #{tpu_custom_call.1} parent=5 // pred_check
        %p202 = pneg %p201
      $region30: #{tpu_custom_call.1} parent=5 // pred_check_branch
        %204 = sbr.rel (%p202) target = $region32
      $region31: #{tpu_custom_call.1} parent=5 // pred_region
        // Predicated region
        $region33: #{tpu_custom_call.1} parent=31 // pred_check
          %p205 = pneg %p38
        $region34: #{tpu_custom_call.1} parent=31 // pred_check_branch
          %207 = sbr.rel (%p205) target = $region36
        $region35: #{tpu_custom_call.1} parent=31 // pred_region
          %s208 = sand.u32 %s28, 1
          %s209 = scalar_lea.sflag [#allocation3], %s208
          %s210 = sand.u32 %s28, 1
          %s211 = smul.addr %s210, 8
          %s212 = scalar_lea.vmem [#allocation2], %s211
          %s214 = ssub.s32 128, 128
          %215 = vsyncadd %s209, %s214
          %s216 = smul.addr %s18, 128
          %s217 = scalar_lea.hbm %s0, %s216
          %s219 = sshll.u32 %s212, 4
          %s220 = int_to_ptr.vmem [resolvable:$true] %s219
          %222 = dma.hbm_to_vmem [thread:$0]  %s217, 128, %s220, %s209
        $region36: #{tpu_custom_call.1} parent=31 // pred_fallthru
          _
      $region32: #{tpu_custom_call.1} parent=5 // pred_fallthru
        _
      %p223 = scmp.le.s32.totalorder 1, %s18
      %p224 = scmp.lt.s32.totalorder %s18, 3
      %p225 = pnand %p223, %p224
      %p226 = pneg %p225
      // Predicated region
      $region37: #{tpu_custom_call.1} parent=5 // pred_check
        _
      $region38: #{tpu_custom_call.1} parent=5 // pred_check_branch
        %228 = sbr.rel (%p225) target = $region40
      $region39: #{tpu_custom_call.1} parent=5 // pred_region
        %s229 = ssub.s32 %s18, 1
        %s230 = sand.u32 %s31, 1
        %s231 = scalar_lea.sflag [#allocation3], %s230
        %s232 = sand.u32 %s31, 1
        %s233 = smul.addr %s232, 8
        %s234 = scalar_lea.vmem [#allocation2], %s233
        // Predicated region
        $region41: #{tpu_custom_call.1} parent=39 // pred_check
          %p235 = pneg %p44
        $region42: #{tpu_custom_call.1} parent=39 // pred_check_branch
          %237 = sbr.rel (%p235) target = $region44
        $region43: #{tpu_custom_call.1} parent=39 // pred_region
          %238 = dma.done %s231, 128
        $region44: #{tpu_custom_call.1} parent=39 // pred_fallthru
          _
        // Predicated region
        $region45: #{tpu_custom_call.1} parent=39 // pred_check
          %p239 = pneg %p65
        $region46: #{tpu_custom_call.1} parent=39 // pred_check_branch
          %241 = sbr.rel (%p239) target = $region48
        $region47: #{tpu_custom_call.1} parent=39 // pred_region
          %242 = dma.done [#allocation6], 512
        $region48: #{tpu_custom_call.1} parent=39 // pred_fallthru
          _
        // Predicated region
        $region49: #{tpu_custom_call.1} parent=39 // pred_check
          %p243 = pneg %p107
        $region50: #{tpu_custom_call.1} parent=39 // pred_check_branch
          %245 = sbr.rel (%p243) target = $region52
        $region51: #{tpu_custom_call.1} parent=39 // pred_region
          %246 = dma.done [#allocation6], 512
        $region52: #{tpu_custom_call.1} parent=39 // pred_fallthru
          _
        %s247 = sand.u32 %s31, 1
        %s248 = scalar_lea.sflag [#allocation3], %s247
        %s249 = sand.u32 %s31, 1
        %s250 = smul.addr %s249, 8
        %s251 = scalar_lea.vmem [#allocation2], %s250
        %p252 = pneg %p44
        %p253 = pneg %p41
        %p254 = pneg %p65
        %p255 = pneg %p62
        %p256 = pneg %p86
        %p257 = pneg %p83
        %p258 = pneg %p107
        %p259 = pneg %p104
        %p260 = pneg %p128
        %p261 = pneg %p125
        %p262 = pneg %p154
        %p263 = pneg %p151
        %s264 = sand.u32 %s141, 1
        %s265 = scalar_lea.sflag [#allocation4], %s264
        %s266 = sand.u32 %s141, 1
        %s267 = smul.addr %s266, 8
        %s268 = scalar_lea.vmem [#allocation8], %s267
        %v269 = vld [vmem:[%s234] sm:$0xff]
        %v270 = vld [vmem:[#allocation5] sm:$0xff]
        %v271 = vld [vmem:[#allocation5 + $0x8] sm:$0xff]
        %v272 = vld [vmem:[#allocation5 + $0x10] sm:$0xff]
        %v273 = vld [vmem:[#allocation5 + $0x18] sm:$0xff]
        %v274 = vld [vmem:[#allocation7] sm:$0xff]
        %v275 = vld [vmem:[#allocation7 + $0x8] sm:$0xff]
        %v276 = vld [vmem:[#allocation7 + $0x10] sm:$0xff]
        %v277 = vld [vmem:[#allocation7 + $0x18] sm:$0xff]
        %v278 = vld [vmem:[%s2] sm:$0x1]
        %v279 = vld [vmem:[%s4] sm:$0x1]
        %v281 = vlaneseq
        %v282 = vshrl.u32 %v281, 7
        %v283 = vsub.s32 0, %v282
        %v284 = vrot.slane %v278, %v283
        %vm286 = vcmask 261120
        %v288 = vsel %vm286, %v269, 0
        %290 = vmatprep.subr.mxu0 0.0
        %291 = vmatpush1.msra.mxu0 %v270
        %292 = vmatprep.subr.mxu0 0.0
        %293 = vmatpush1.msra.mxu0 %v271
        %294 = vmatprep.subr.mxu0 0.0
        %295 = vmatpush1.msra.mxu0 %v272
        %296 = vmatprep.subr.mxu0 0.0
        %297 = vmatpush1.msra.mxu0 %v273
        %298 = vmatprep.subr.mxu0 0.0
        %299 = vmatpush1.msra.mxu0 0.0
        %300 = vmatprep.subr.mxu0 0.0
        %301 = vmatpush1.msra.mxu0 0.0
        %302 = vmatprep.subr.mxu0 0.0
        %303 = vmatpush1.msra.mxu0 0.0
        %304 = vmatprep.subr.mxu0 0.0
        %305 = vmatpush1.msra.mxu0 0.0
        %306 = vmatprep.subr.mxu0 0.0
        %307 = vmatpush1.msra.mxu0 0.0
        %308 = vmatprep.subr.mxu0 0.0
        %309 = vmatpush1.msra.mxu0 0.0
        %310 = vmatprep.subr.mxu0 0.0
        %311 = vmatpush1.msra.mxu0 0.0
        %312 = vmatprep.subr.mxu0 0.0
        %313 = vmatpush1.msra.mxu0 0.0
        %314 = vmatprep.subr.mxu0 0.0
        %315 = vmatpush1.msra.mxu0 0.0
        %316 = vmatprep.subr.mxu0 0.0
        %317 = vmatpush1.msra.mxu0 0.0
        %318 = vmatprep.subr.mxu0 0.0
        %319 = vmatpush1.msra.mxu0 0.0
        %320 = vmatprep.subr.mxu0 0.0
        %321 = vmatpush1.msra.mxu0 0.0
        %322 = vmatprep.subr.mxu0 0.0
        %323 = vmatpush1.msra.mxu0 0.0
        %324 = vmatprep.subr.mxu0 0.0
        %325 = vmatpush1.msra.mxu0 0.0
        %326 = vmatprep.subr.mxu0 0.0
        %327 = vmatpush1.msra.mxu0 0.0
        %328 = vmatprep.subr.mxu0 0.0
        %329 = vmatpush1.msra.mxu0 0.0
        %330 = vmatprep.subr.mxu0 0.0
        %331 = vmatpush1.msra.mxu0 0.0
        %332 = vmatprep.subr.mxu0 0.0
        %333 = vmatpush1.msra.mxu0 0.0
        %334 = vmatprep.subr.mxu0 0.0
        %335 = vmatpush1.msra.mxu0 0.0
        %336 = vmatprep.subr.mxu0 0.0
        %337 = vmatpush1.msra.mxu0 0.0
        %338 = vmatprep.subr.mxu0 0.0
        %339 = vmatpush1.msra.mxu0 0.0
        %340 = vmatprep.subr.mxu0 0.0
        %341 = vmatpush1.msra.mxu0 0.0
        %342 = vmatprep.subr.mxu0 0.0
        %343 = vmatpush1.msra.mxu0 0.0
        %344 = vmatprep.subr.mxu0 0.0
        %345 = vmatpush1.msra.mxu0 0.0
        %346 = vmatprep.subr.mxu0 0.0
        %347 = vmatpush1.msra.mxu0 0.0
        %348 = vmatprep.subr.mxu0 0.0
        %349 = vmatpush1.msra.mxu0 0.0
        %350 = vmatprep.subr.mxu0 0.0
        %351 = vmatpush1.msra.mxu0 0.0
        %352 = vmatprep.subr.mxu0 0.0
        %353 = vmatpush1.msra.mxu0 0.0
        %354 = vmatprep.mubr.f32.mxu0 0.0
        %355 = vmatmul.mubr.f32.gmra.mrb[0].mxu0 %v288
        %v356 = vpop.f32.mrb[0].mxu0
        %v357 = vadd.f32 %v284, %v356
        %v358 = vpop.f32.mrb[0].mxu0
        %359 = vdwg.mxu0
        %361 = vrot.lane.b32.xlu0 %v357, 96
        %v362 = vpop.permute.xlu0 %361
        %vm363 = vcmask 64512
        %v364 = vsel %vm363, %v357, 0
        %v366 = vsel %vm363, %v362, 0
        %368 = vmatprep.subr.mxu0 0.0
        %369 = vmatpush1.xpose.msra.mxu0 %v366
        %370 = vmatprep.subr.mxu0 0.0
        %371 = vmatpush1.xpose.msra.mxu0 0.0
        %372 = vmatprep.subr.mxu0 0.0
        %373 = vmatpush1.xpose.msra.mxu0 0.0
        %374 = vmatprep.subr.mxu0 0.0
        %375 = vmatpush1.xpose.msra.mxu0 0.0
        %376 = vmatprep.subr.mxu0 0.0
        %377 = vmatpush1.xpose.msra.mxu0 0.0
        %378 = vmatprep.subr.mxu0 0.0
        %379 = vmatpush1.xpose.msra.mxu0 0.0
        %380 = vmatprep.subr.mxu0 0.0
        %381 = vmatpush1.xpose.msra.mxu0 0.0
        %382 = vmatprep.subr.mxu0 0.0
        %383 = vmatpush1.xpose.msra.mxu0 0.0
        %384 = vmatprep.subr.mxu0 0.0
        %385 = vmatpush1.xpose.msra.mxu0 0.0
        %386 = vmatprep.subr.mxu0 0.0
        %387 = vmatpush1.xpose.msra.mxu0 0.0
        %388 = vmatprep.subr.mxu0 0.0
        %389 = vmatpush1.xpose.msra.mxu0 0.0
        %390 = vmatprep.subr.mxu0 0.0
        %391 = vmatpush1.xpose.msra.mxu0 0.0
        %392 = vmatprep.subr.mxu0 0.0
        %393 = vmatpush1.xpose.msra.mxu0 0.0
        %394 = vmatprep.subr.mxu0 0.0
        %395 = vmatpush1.xpose.msra.mxu0 0.0
        %396 = vmatprep.subr.mxu0 0.0
        %397 = vmatpush1.xpose.msra.mxu0 0.0
        %398 = vmatprep.subr.mxu0 0.0
        %399 = vmatpush1.xpose.msra.mxu0 0.0
        %400 = vmatprep.subr.mxu0 0.0
        %401 = vmatpush1.xpose.msra.mxu0 0.0
        %402 = vmatprep.subr.mxu0 0.0
        %403 = vmatpush1.xpose.msra.mxu0 0.0
        %404 = vmatprep.subr.mxu0 0.0
        %405 = vmatpush1.xpose.msra.mxu0 0.0
        %406 = vmatprep.subr.mxu0 0.0
        %407 = vmatpush1.xpose.msra.mxu0 0.0
        %408 = vmatprep.subr.mxu0 0.0
        %409 = vmatpush1.xpose.msra.mxu0 0.0
        %410 = vmatprep.subr.mxu0 0.0
        %411 = vmatpush1.xpose.msra.mxu0 0.0
        %412 = vmatprep.subr.mxu0 0.0
        %413 = vmatpush1.xpose.msra.mxu0 0.0
        %414 = vmatprep.subr.mxu0 0.0
        %415 = vmatpush1.xpose.msra.mxu0 0.0
        %416 = vmatprep.subr.mxu0 0.0
        %417 = vmatpush1.xpose.msra.mxu0 0.0
        %418 = vmatprep.subr.mxu0 0.0
        %419 = vmatpush1.xpose.msra.mxu0 0.0
        %420 = vmatprep.subr.mxu0 0.0
        %421 = vmatpush1.xpose.msra.mxu0 0.0
        %422 = vmatprep.subr.mxu0 0.0
        %423 = vmatpush1.xpose.msra.mxu0 0.0
        %424 = vmatprep.subr.mxu0 0.0
        %425 = vmatpush1.xpose.msra.mxu0 0.0
        %426 = vmatprep.subr.mxu0 0.0
        %427 = vmatpush1.xpose.msra.mxu0 0.0
        %428 = vmatprep.subr.mxu0 0.0
        %429 = vmatpush1.xpose.msra.mxu0 0.0
        %430 = vmatprep.subr.mxu0 0.0
        %431 = vmatpush1.xpose.msra.mxu0 0.0
        %432 = vmatprep.mubr.f32.mxu0 0.0
        %433 = vmatmul.mubr.f32.gmra.mrb[0].mxu0 %v364
        %v434 = vpop.f32.mrb[0].mxu0
        %v435 = vadd.f32 0.0, %v434
        %v436 = vpop.f32.mrb[0].mxu0
        %437 = vdwg.mxu0
        %v438 = vsel %vm363, %v435, -inf
        %439 = vmax.xlane.f32.xlu0 %v438
        %v440 = vpop.xlane.xlu0 %439
        %v441 = vsub.f32 %v435, %v440
        %v442 = vmul.f32 %v441, 1.442695
        %v443 = vpow.pop %v442
        %v444 = vsel %vm363, %v443, 0.0
        %445 = vadd.xlane.f32.xlu0 %v444
        %v446 = vpop.xlane.xlu0 %445
        %v447 = vrcp.pop %v446
        %v448 = vmul.f32 %v443, %v447
        %449 = vrot.lane.b32.xlu0 %v357, 64
        %v450 = vpop.permute.xlu0 %449
        %v453 = vsel %vm363, %v448, 0
        %455 = vmatprep.subr.mxu0 0.0
        %456 = vmatpush1.msra.mxu0 %v450
        %457 = vmatprep.subr.mxu0 0.0
        %458 = vmatpush1.msra.mxu0 0.0
        %459 = vmatprep.subr.mxu0 0.0
        %460 = vmatpush1.msra.mxu0 0.0
        %461 = vmatprep.subr.mxu0 0.0
        %462 = vmatpush1.msra.mxu0 0.0
        %463 = vmatprep.subr.mxu0 0.0
        %464 = vmatpush1.msra.mxu0 0.0
        %465 = vmatprep.subr.mxu0 0.0
        %466 = vmatpush1.msra.mxu0 0.0
        %467 = vmatprep.subr.mxu0 0.0
        %468 = vmatpush1.msra.mxu0 0.0
        %469 = vmatprep.subr.mxu0 0.0
        %470 = vmatpush1.msra.mxu0 0.0
        %471 = vmatprep.subr.mxu0 0.0
        %472 = vmatpush1.msra.mxu0 0.0
        %473 = vmatprep.subr.mxu0 0.0
        %474 = vmatpush1.msra.mxu0 0.0
        %475 = vmatprep.subr.mxu0 0.0
        %476 = vmatpush1.msra.mxu0 0.0
        %477 = vmatprep.subr.mxu0 0.0
        %478 = vmatpush1.msra.mxu0 0.0
        %479 = vmatprep.subr.mxu0 0.0
        %480 = vmatpush1.msra.mxu0 0.0
        %481 = vmatprep.subr.mxu0 0.0
        %482 = vmatpush1.msra.mxu0 0.0
        %483 = vmatprep.subr.mxu0 0.0
        %484 = vmatpush1.msra.mxu0 0.0
        %485 = vmatprep.subr.mxu0 0.0
        %486 = vmatpush1.msra.mxu0 0.0
        %487 = vmatprep.subr.mxu0 0.0
        %488 = vmatpush1.msra.mxu0 0.0
        %489 = vmatprep.subr.mxu0 0.0
        %490 = vmatpush1.msra.mxu0 0.0
        %491 = vmatprep.subr.mxu0 0.0
        %492 = vmatpush1.msra.mxu0 0.0
        %493 = vmatprep.subr.mxu0 0.0
        %494 = vmatpush1.msra.mxu0 0.0
        %495 = vmatprep.subr.mxu0 0.0
        %496 = vmatpush1.msra.mxu0 0.0
        %497 = vmatprep.subr.mxu0 0.0
        %498 = vmatpush1.msra.mxu0 0.0
        %499 = vmatprep.subr.mxu0 0.0
        %500 = vmatpush1.msra.mxu0 0.0
        %501 = vmatprep.subr.mxu0 0.0
        %502 = vmatpush1.msra.mxu0 0.0
        %503 = vmatprep.subr.mxu0 0.0
        %504 = vmatpush1.msra.mxu0 0.0
        %505 = vmatprep.subr.mxu0 0.0
        %506 = vmatpush1.msra.mxu0 0.0
        %507 = vmatprep.subr.mxu0 0.0
        %508 = vmatpush1.msra.mxu0 0.0
        %509 = vmatprep.subr.mxu0 0.0
        %510 = vmatpush1.msra.mxu0 0.0
        %511 = vmatprep.subr.mxu0 0.0
        %512 = vmatpush1.msra.mxu0 0.0
        %513 = vmatprep.subr.mxu0 0.0
        %514 = vmatpush1.msra.mxu0 0.0
        %515 = vmatprep.subr.mxu0 0.0
        %516 = vmatpush1.msra.mxu0 0.0
        %517 = vmatprep.subr.mxu0 0.0
        %518 = vmatpush1.msra.mxu0 0.0
        %519 = vmatprep.mubr.f32.mxu0 0.0
        %520 = vmatmul.mubr.f32.gmra.mrb[0].mxu0 %v453
        %v521 = vpop.f32.mrb[0].mxu0
        %v522 = vadd.f32 0.0, %v521
        %v523 = vpop.f32.mrb[0].mxu0
        %524 = vdwg.mxu0
        %525 = vrot.lane.b32.xlu0 %v357, 120
        %v526 = vpop.permute.xlu0 %525
        %527 = vrot.lane.b32.xlu0 %v357, 88
        %v528 = vpop.permute.xlu0 %527
        %v529 = vsel %vm363, %v526, 0
        %v531 = vsel %vm363, %v528, 0
        %533 = vmatprep.subr.mxu0 0.0
        %534 = vmatpush1.xpose.msra.mxu0 %v531
        %535 = vmatprep.subr.mxu0 0.0
        %536 = vmatpush1.xpose.msra.mxu0 0.0
        %537 = vmatprep.subr.mxu0 0.0
        %538 = vmatpush1.xpose.msra.mxu0 0.0
        %539 = vmatprep.subr.mxu0 0.0
        %540 = vmatpush1.xpose.msra.mxu0 0.0
        %541 = vmatprep.subr.mxu0 0.0
        %542 = vmatpush1.xpose.msra.mxu0 0.0
        %543 = vmatprep.subr.mxu0 0.0
        %544 = vmatpush1.xpose.msra.mxu0 0.0
        %545 = vmatprep.subr.mxu0 0.0
        %546 = vmatpush1.xpose.msra.mxu0 0.0
        %547 = vmatprep.subr.mxu0 0.0
        %548 = vmatpush1.xpose.msra.mxu0 0.0
        %549 = vmatprep.subr.mxu0 0.0
        %550 = vmatpush1.xpose.msra.mxu0 0.0
        %551 = vmatprep.subr.mxu0 0.0
        %552 = vmatpush1.xpose.msra.mxu0 0.0
        %553 = vmatprep.subr.mxu0 0.0
        %554 = vmatpush1.xpose.msra.mxu0 0.0
        %555 = vmatprep.subr.mxu0 0.0
        %556 = vmatpush1.xpose.msra.mxu0 0.0
        %557 = vmatprep.subr.mxu0 0.0
        %558 = vmatpush1.xpose.msra.mxu0 0.0
        %559 = vmatprep.subr.mxu0 0.0
        %560 = vmatpush1.xpose.msra.mxu0 0.0
        %561 = vmatprep.subr.mxu0 0.0
        %562 = vmatpush1.xpose.msra.mxu0 0.0
        %563 = vmatprep.subr.mxu0 0.0
        %564 = vmatpush1.xpose.msra.mxu0 0.0
        %565 = vmatprep.subr.mxu0 0.0
        %566 = vmatpush1.xpose.msra.mxu0 0.0
        %567 = vmatprep.subr.mxu0 0.0
        %568 = vmatpush1.xpose.msra.mxu0 0.0
        %569 = vmatprep.subr.mxu0 0.0
        %570 = vmatpush1.xpose.msra.mxu0 0.0
        %571 = vmatprep.subr.mxu0 0.0
        %572 = vmatpush1.xpose.msra.mxu0 0.0
        %573 = vmatprep.subr.mxu0 0.0
        %574 = vmatpush1.xpose.msra.mxu0 0.0
        %575 = vmatprep.subr.mxu0 0.0
        %576 = vmatpush1.xpose.msra.mxu0 0.0
        %577 = vmatprep.subr.mxu0 0.0
        %578 = vmatpush1.xpose.msra.mxu0 0.0
        %579 = vmatprep.subr.mxu0 0.0
        %580 = vmatpush1.xpose.msra.mxu0 0.0
        %581 = vmatprep.subr.mxu0 0.0
        %582 = vmatpush1.xpose.msra.mxu0 0.0
        %583 = vmatprep.subr.mxu0 0.0
        %584 = vmatpush1.xpose.msra.mxu0 0.0
        %585 = vmatprep.subr.mxu0 0.0
        %586 = vmatpush1.xpose.msra.mxu0 0.0
        %587 = vmatprep.subr.mxu0 0.0
        %588 = vmatpush1.xpose.msra.mxu0 0.0
        %589 = vmatprep.subr.mxu0 0.0
        %590 = vmatpush1.xpose.msra.mxu0 0.0
        %591 = vmatprep.subr.mxu0 0.0
        %592 = vmatpush1.xpose.msra.mxu0 0.0
        %593 = vmatprep.subr.mxu0 0.0
        %594 = vmatpush1.xpose.msra.mxu0 0.0
        %595 = vmatprep.subr.mxu0 0.0
        %596 = vmatpush1.xpose.msra.mxu0 0.0
        %597 = vmatprep.mubr.f32.mxu0 0.0
        %598 = vmatmul.mubr.f32.gmra.mrb[0].mxu0 %v529
        %v599 = vpop.f32.mrb[0].mxu0
        %v600 = vadd.f32 0.0, %v599
        %v601 = vpop.f32.mrb[0].mxu0
        %602 = vdwg.mxu0
        %v603 = vsel %vm363, %v600, -inf
        %604 = vmax.xlane.f32.xlu0 %v603
        %v605 = vpop.xlane.xlu0 %604
        %v606 = vsub.f32 %v600, %v605
        %v607 = vmul.f32 %v606, 1.442695
        %v608 = vpow.pop %v607
        %v609 = vsel %vm363, %v608, 0.0
        %610 = vadd.xlane.f32.xlu0 %v609
        %v611 = vpop.xlane.xlu0 %610
        %v612 = vrcp.pop %v611
        %v613 = vmul.f32 %v608, %v612
        %614 = vrot.lane.b32.xlu0 %v357, 56
        %v615 = vpop.permute.xlu0 %614
        %v618 = vsel %vm363, %v613, 0
        %620 = vmatprep.subr.mxu0 0.0
        %621 = vmatpush1.msra.mxu0 %v615
        %622 = vmatprep.subr.mxu0 0.0
        %623 = vmatpush1.msra.mxu0 0.0
        %624 = vmatprep.subr.mxu0 0.0
        %625 = vmatpush1.msra.mxu0 0.0
        %626 = vmatprep.subr.mxu0 0.0
        %627 = vmatpush1.msra.mxu0 0.0
        %628 = vmatprep.subr.mxu0 0.0
        %629 = vmatpush1.msra.mxu0 0.0
        %630 = vmatprep.subr.mxu0 0.0
        %631 = vmatpush1.msra.mxu0 0.0
        %632 = vmatprep.subr.mxu0 0.0
        %633 = vmatpush1.msra.mxu0 0.0
        %634 = vmatprep.subr.mxu0 0.0
        %635 = vmatpush1.msra.mxu0 0.0
        %636 = vmatprep.subr.mxu0 0.0
        %637 = vmatpush1.msra.mxu0 0.0
        %638 = vmatprep.subr.mxu0 0.0
        %639 = vmatpush1.msra.mxu0 0.0
        %640 = vmatprep.subr.mxu0 0.0
        %641 = vmatpush1.msra.mxu0 0.0
        %642 = vmatprep.subr.mxu0 0.0
        %643 = vmatpush1.msra.mxu0 0.0
        %644 = vmatprep.subr.mxu0 0.0
        %645 = vmatpush1.msra.mxu0 0.0
        %646 = vmatprep.subr.mxu0 0.0
        %647 = vmatpush1.msra.mxu0 0.0
        %648 = vmatprep.subr.mxu0 0.0
        %649 = vmatpush1.msra.mxu0 0.0
        %650 = vmatprep.subr.mxu0 0.0
        %651 = vmatpush1.msra.mxu0 0.0
        %652 = vmatprep.subr.mxu0 0.0
        %653 = vmatpush1.msra.mxu0 0.0
        %654 = vmatprep.subr.mxu0 0.0
        %655 = vmatpush1.msra.mxu0 0.0
        %656 = vmatprep.subr.mxu0 0.0
        %657 = vmatpush1.msra.mxu0 0.0
        %658 = vmatprep.subr.mxu0 0.0
        %659 = vmatpush1.msra.mxu0 0.0
        %660 = vmatprep.subr.mxu0 0.0
        %661 = vmatpush1.msra.mxu0 0.0
        %662 = vmatprep.subr.mxu0 0.0
        %663 = vmatpush1.msra.mxu0 0.0
        %664 = vmatprep.subr.mxu0 0.0
        %665 = vmatpush1.msra.mxu0 0.0
        %666 = vmatprep.subr.mxu0 0.0
        %667 = vmatpush1.msra.mxu0 0.0
        %668 = vmatprep.subr.mxu0 0.0
        %669 = vmatpush1.msra.mxu0 0.0
        %670 = vmatprep.subr.mxu0 0.0
        %671 = vmatpush1.msra.mxu0 0.0
        %672 = vmatprep.subr.mxu0 0.0
        %673 = vmatpush1.msra.mxu0 0.0
        %674 = vmatprep.subr.mxu0 0.0
        %675 = vmatpush1.msra.mxu0 0.0
        %676 = vmatprep.subr.mxu0 0.0
        %677 = vmatpush1.msra.mxu0 0.0
        %678 = vmatprep.subr.mxu0 0.0
        %679 = vmatpush1.msra.mxu0 0.0
        %680 = vmatprep.subr.mxu0 0.0
        %681 = vmatpush1.msra.mxu0 0.0
        %682 = vmatprep.subr.mxu0 0.0
        %683 = vmatpush1.msra.mxu0 0.0
        %684 = vmatprep.mubr.f32.mxu0 0.0
        %685 = vmatmul.mubr.f32.gmra.mrb[0].mxu0 %v618
        %v686 = vpop.f32.mrb[0].mxu0
        %v687 = vadd.f32 0.0, %v686
        %v688 = vpop.f32.mrb[0].mxu0
        %689 = vdwg.mxu0
        %690 = vrot.lane.b32.xlu0 %v357, 112
        %v691 = vpop.permute.xlu0 %690
        %692 = vrot.lane.b32.xlu0 %v357, 80
        %v693 = vpop.permute.xlu0 %692
        %v694 = vsel %vm363, %v691, 0
        %v696 = vsel %vm363, %v693, 0
        %698 = vmatprep.subr.mxu0 0.0
        %699 = vmatpush1.xpose.msra.mxu0 %v696
        %700 = vmatprep.subr.mxu0 0.0
        %701 = vmatpush1.xpose.msra.mxu0 0.0
        %702 = vmatprep.subr.mxu0 0.0
        %703 = vmatpush1.xpose.msra.mxu0 0.0
        %704 = vmatprep.subr.mxu0 0.0
        %705 = vmatpush1.xpose.msra.mxu0 0.0
        %706 = vmatprep.subr.mxu0 0.0
        %707 = vmatpush1.xpose.msra.mxu0 0.0
        %708 = vmatprep.subr.mxu0 0.0
        %709 = vmatpush1.xpose.msra.mxu0 0.0
        %710 = vmatprep.subr.mxu0 0.0
        %711 = vmatpush1.xpose.msra.mxu0 0.0
        %712 = vmatprep.subr.mxu0 0.0
        %713 = vmatpush1.xpose.msra.mxu0 0.0
        %714 = vmatprep.subr.mxu0 0.0
        %715 = vmatpush1.xpose.msra.mxu0 0.0
        %716 = vmatprep.subr.mxu0 0.0
        %717 = vmatpush1.xpose.msra.mxu0 0.0
        %718 = vmatprep.subr.mxu0 0.0
        %719 = vmatpush1.xpose.msra.mxu0 0.0
        %720 = vmatprep.subr.mxu0 0.0
        %721 = vmatpush1.xpose.msra.mxu0 0.0
        %722 = vmatprep.subr.mxu0 0.0
        %723 = vmatpush1.xpose.msra.mxu0 0.0
        %724 = vmatprep.subr.mxu0 0.0
        %725 = vmatpush1.xpose.msra.mxu0 0.0
        %726 = vmatprep.subr.mxu0 0.0
        %727 = vmatpush1.xpose.msra.mxu0 0.0
        %728 = vmatprep.subr.mxu0 0.0
        %729 = vmatpush1.xpose.msra.mxu0 0.0
        %730 = vmatprep.subr.mxu0 0.0
        %731 = vmatpush1.xpose.msra.mxu0 0.0
        %732 = vmatprep.subr.mxu0 0.0
        %733 = vmatpush1.xpose.msra.mxu0 0.0
        %734 = vmatprep.subr.mxu0 0.0
        %735 = vmatpush1.xpose.msra.mxu0 0.0
        %736 = vmatprep.subr.mxu0 0.0
        %737 = vmatpush1.xpose.msra.mxu0 0.0
        %738 = vmatprep.subr.mxu0 0.0
        %739 = vmatpush1.xpose.msra.mxu0 0.0
        %740 = vmatprep.subr.mxu0 0.0
        %741 = vmatpush1.xpose.msra.mxu0 0.0
        %742 = vmatprep.subr.mxu0 0.0
        %743 = vmatpush1.xpose.msra.mxu0 0.0
        %744 = vmatprep.subr.mxu0 0.0
        %745 = vmatpush1.xpose.msra.mxu0 0.0
        %746 = vmatprep.subr.mxu0 0.0
        %747 = vmatpush1.xpose.msra.mxu0 0.0
        %748 = vmatprep.subr.mxu0 0.0
        %749 = vmatpush1.xpose.msra.mxu0 0.0
        %750 = vmatprep.subr.mxu0 0.0
        %751 = vmatpush1.xpose.msra.mxu0 0.0
        %752 = vmatprep.subr.mxu0 0.0
        %753 = vmatpush1.xpose.msra.mxu0 0.0
        %754 = vmatprep.subr.mxu0 0.0
        %755 = vmatpush1.xpose.msra.mxu0 0.0
        %756 = vmatprep.subr.mxu0 0.0
        %757 = vmatpush1.xpose.msra.mxu0 0.0
        %758 = vmatprep.subr.mxu0 0.0
        %759 = vmatpush1.xpose.msra.mxu0 0.0
        %760 = vmatprep.subr.mxu0 0.0
        %761 = vmatpush1.xpose.msra.mxu0 0.0
        %762 = vmatprep.mubr.f32.mxu0 0.0
        %763 = vmatmul.mubr.f32.gmra.mrb[0].mxu0 %v694
        %v764 = vpop.f32.mrb[0].mxu0
        %v765 = vadd.f32 0.0, %v764
        %v766 = vpop.f32.mrb[0].mxu0
        %767 = vdwg.mxu0
        %v768 = vsel %vm363, %v765, -inf
        %769 = vmax.xlane.f32.xlu0 %v768
        %v770 = vpop.xlane.xlu0 %769
        %v771 = vsub.f32 %v765, %v770
        %v772 = vmul.f32 %v771, 1.442695
        %v773 = vpow.pop %v772
        %v774 = vsel %vm363, %v773, 0.0
        %775 = vadd.xlane.f32.xlu0 %v774
        %v776 = vpop.xlane.xlu0 %775
        %v777 = vrcp.pop %v776
        %v778 = vmul.f32 %v773, %v777
        %779 = vrot.lane.b32.xlu0 %v357, 48
        %v780 = vpop.permute.xlu0 %779
        %v783 = vsel %vm363, %v778, 0
        %785 = vmatprep.subr.mxu0 0.0
        %786 = vmatpush1.msra.mxu0 %v780
        %787 = vmatprep.subr.mxu0 0.0
        %788 = vmatpush1.msra.mxu0 0.0
        %789 = vmatprep.subr.mxu0 0.0
        %790 = vmatpush1.msra.mxu0 0.0
        %791 = vmatprep.subr.mxu0 0.0
        %792 = vmatpush1.msra.mxu0 0.0
        %793 = vmatprep.subr.mxu0 0.0
        %794 = vmatpush1.msra.mxu0 0.0
        %795 = vmatprep.subr.mxu0 0.0
        %796 = vmatpush1.msra.mxu0 0.0
        %797 = vmatprep.subr.mxu0 0.0
        %798 = vmatpush1.msra.mxu0 0.0
        %799 = vmatprep.subr.mxu0 0.0
        %800 = vmatpush1.msra.mxu0 0.0
        %801 = vmatprep.subr.mxu0 0.0
        %802 = vmatpush1.msra.mxu0 0.0
        %803 = vmatprep.subr.mxu0 0.0
        %804 = vmatpush1.msra.mxu0 0.0
        %805 = vmatprep.subr.mxu0 0.0
        %806 = vmatpush1.msra.mxu0 0.0
        %807 = vmatprep.subr.mxu0 0.0
        %808 = vmatpush1.msra.mxu0 0.0
        %809 = vmatprep.subr.mxu0 0.0
        %810 = vmatpush1.msra.mxu0 0.0
        %811 = vmatprep.subr.mxu0 0.0
        %812 = vmatpush1.msra.mxu0 0.0
        %813 = vmatprep.subr.mxu0 0.0
        %814 = vmatpush1.msra.mxu0 0.0
        %815 = vmatprep.subr.mxu0 0.0
        %816 = vmatpush1.msra.mxu0 0.0
        %817 = vmatprep.subr.mxu0 0.0
        %818 = vmatpush1.msra.mxu0 0.0
        %819 = vmatprep.subr.mxu0 0.0
        %820 = vmatpush1.msra.mxu0 0.0
        %821 = vmatprep.subr.mxu0 0.0
        %822 = vmatpush1.msra.mxu0 0.0
        %823 = vmatprep.subr.mxu0 0.0
        %824 = vmatpush1.msra.mxu0 0.0
        %825 = vmatprep.subr.mxu0 0.0
        %826 = vmatpush1.msra.mxu0 0.0
        %827 = vmatprep.subr.mxu0 0.0
        %828 = vmatpush1.msra.mxu0 0.0
        %829 = vmatprep.subr.mxu0 0.0
        %830 = vmatpush1.msra.mxu0 0.0
        %831 = vmatprep.subr.mxu0 0.0
        %832 = vmatpush1.msra.mxu0 0.0
        %833 = vmatprep.subr.mxu0 0.0
        %834 = vmatpush1.msra.mxu0 0.0
        %835 = vmatprep.subr.mxu0 0.0
        %836 = vmatpush1.msra.mxu0 0.0
        %837 = vmatprep.subr.mxu0 0.0
        %838 = vmatpush1.msra.mxu0 0.0
        %839 = vmatprep.subr.mxu0 0.0
        %840 = vmatpush1.msra.mxu0 0.0
        %841 = vmatprep.subr.mxu0 0.0
        %842 = vmatpush1.msra.mxu0 0.0
        %843 = vmatprep.subr.mxu0 0.0
        %844 = vmatpush1.msra.mxu0 0.0
        %845 = vmatprep.subr.mxu0 0.0
        %846 = vmatpush1.msra.mxu0 0.0
        %847 = vmatprep.subr.mxu0 0.0
        %848 = vmatpush1.msra.mxu0 0.0
        %849 = vmatprep.mubr.f32.mxu0 0.0
        %850 = vmatmul.mubr.f32.gmra.mrb[0].mxu0 %v783
        %v851 = vpop.f32.mrb[0].mxu0
        %v852 = vadd.f32 0.0, %v851
        %v853 = vpop.f32.mrb[0].mxu0
        %854 = vdwg.mxu0
        %855 = vrot.lane.b32.xlu0 %v357, 104
        %v856 = vpop.permute.xlu0 %855
        %857 = vrot.lane.b32.xlu0 %v357, 72
        %v858 = vpop.permute.xlu0 %857
        %v859 = vsel %vm363, %v856, 0
        %v861 = vsel %vm363, %v858, 0
        %863 = vmatprep.subr.mxu0 0.0
        %864 = vmatpush1.xpose.msra.mxu0 %v861
        %865 = vmatprep.subr.mxu0 0.0
        %866 = vmatpush1.xpose.msra.mxu0 0.0
        %867 = vmatprep.subr.mxu0 0.0
        %868 = vmatpush1.xpose.msra.mxu0 0.0
        %869 = vmatprep.subr.mxu0 0.0
        %870 = vmatpush1.xpose.msra.mxu0 0.0
        %871 = vmatprep.subr.mxu0 0.0
        %872 = vmatpush1.xpose.msra.mxu0 0.0
        %873 = vmatprep.subr.mxu0 0.0
        %874 = vmatpush1.xpose.msra.mxu0 0.0
        %875 = vmatprep.subr.mxu0 0.0
        %876 = vmatpush1.xpose.msra.mxu0 0.0
        %877 = vmatprep.subr.mxu0 0.0
        %878 = vmatpush1.xpose.msra.mxu0 0.0
        %879 = vmatprep.subr.mxu0 0.0
        %880 = vmatpush1.xpose.msra.mxu0 0.0
        %881 = vmatprep.subr.mxu0 0.0
        %882 = vmatpush1.xpose.msra.mxu0 0.0
        %883 = vmatprep.subr.mxu0 0.0
        %884 = vmatpush1.xpose.msra.mxu0 0.0
        %885 = vmatprep.subr.mxu0 0.0
        %886 = vmatpush1.xpose.msra.mxu0 0.0
        %887 = vmatprep.subr.mxu0 0.0
        %888 = vmatpush1.xpose.msra.mxu0 0.0
        %889 = vmatprep.subr.mxu0 0.0
        %890 = vmatpush1.xpose.msra.mxu0 0.0
        %891 = vmatprep.subr.mxu0 0.0
        %892 = vmatpush1.xpose.msra.mxu0 0.0
        %893 = vmatprep.subr.mxu0 0.0
        %894 = vmatpush1.xpose.msra.mxu0 0.0
        %895 = vmatprep.subr.mxu0 0.0
        %896 = vmatpush1.xpose.msra.mxu0 0.0
        %897 = vmatprep.subr.mxu0 0.0
        %898 = vmatpush1.xpose.msra.mxu0 0.0
        %899 = vmatprep.subr.mxu0 0.0
        %900 = vmatpush1.xpose.msra.mxu0 0.0
        %901 = vmatprep.subr.mxu0 0.0
        %902 = vmatpush1.xpose.msra.mxu0 0.0
        %903 = vmatprep.subr.mxu0 0.0
        %904 = vmatpush1.xpose.msra.mxu0 0.0
        %905 = vmatprep.subr.mxu0 0.0
        %906 = vmatpush1.xpose.msra.mxu0 0.0
        %907 = vmatprep.subr.mxu0 0.0
        %908 = vmatpush1.xpose.msra.mxu0 0.0
        %909 = vmatprep.subr.mxu0 0.0
        %910 = vmatpush1.xpose.msra.mxu0 0.0
        %911 = vmatprep.subr.mxu0 0.0
        %912 = vmatpush1.xpose.msra.mxu0 0.0
        %913 = vmatprep.subr.mxu0 0.0
        %914 = vmatpush1.xpose.msra.mxu0 0.0
        %915 = vmatprep.subr.mxu0 0.0
        %916 = vmatpush1.xpose.msra.mxu0 0.0
        %917 = vmatprep.subr.mxu0 0.0
        %918 = vmatpush1.xpose.msra.mxu0 0.0
        %919 = vmatprep.subr.mxu0 0.0
        %920 = vmatpush1.xpose.msra.mxu0 0.0
        %921 = vmatprep.subr.mxu0 0.0
        %922 = vmatpush1.xpose.msra.mxu0 0.0
        %923 = vmatprep.subr.mxu0 0.0
        %924 = vmatpush1.xpose.msra.mxu0 0.0
        %925 = vmatprep.subr.mxu0 0.0
        %926 = vmatpush1.xpose.msra.mxu0 0.0
        %927 = vmatprep.mubr.f32.mxu0 0.0
        %928 = vmatmul.mubr.f32.gmra.mrb[0].mxu0 %v859
        %v929 = vpop.f32.mrb[0].mxu0
        %v930 = vadd.f32 0.0, %v929
        %v931 = vpop.f32.mrb[0].mxu0
        %932 = vdwg.mxu0
        %v933 = vsel %vm363, %v930, -inf
        %934 = vmax.xlane.f32.xlu0 %v933
        %v935 = vpop.xlane.xlu0 %934
        %v936 = vsub.f32 %v930, %v935
        %v937 = vmul.f32 %v936, 1.442695
        %v938 = vpow.pop %v937
        %v939 = vsel %vm363, %v938, 0.0
        %940 = vadd.xlane.f32.xlu0 %v939
        %v941 = vpop.xlane.xlu0 %940
        %v942 = vrcp.pop %v941
        %v943 = vmul.f32 %v938, %v942
        %944 = vrot.lane.b32.xlu0 %v357, 40
        %v945 = vpop.permute.xlu0 %944
        %v948 = vsel %vm363, %v943, 0
        %950 = vmatprep.subr.mxu0 0.0
        %951 = vmatpush1.msra.mxu0 %v945
        %952 = vmatprep.subr.mxu0 0.0
        %953 = vmatpush1.msra.mxu0 0.0
        %954 = vmatprep.subr.mxu0 0.0
        %955 = vmatpush1.msra.mxu0 0.0
        %956 = vmatprep.subr.mxu0 0.0
        %957 = vmatpush1.msra.mxu0 0.0
        %958 = vmatprep.subr.mxu0 0.0
        %959 = vmatpush1.msra.mxu0 0.0
        %960 = vmatprep.subr.mxu0 0.0
        %961 = vmatpush1.msra.mxu0 0.0
        %962 = vmatprep.subr.mxu0 0.0
        %963 = vmatpush1.msra.mxu0 0.0
        %964 = vmatprep.subr.mxu0 0.0
        %965 = vmatpush1.msra.mxu0 0.0
        %966 = vmatprep.subr.mxu0 0.0
        %967 = vmatpush1.msra.mxu0 0.0
        %968 = vmatprep.subr.mxu0 0.0
        %969 = vmatpush1.msra.mxu0 0.0
        %970 = vmatprep.subr.mxu0 0.0
        %971 = vmatpush1.msra.mxu0 0.0
        %972 = vmatprep.subr.mxu0 0.0
        %973 = vmatpush1.msra.mxu0 0.0
        %974 = vmatprep.subr.mxu0 0.0
        %975 = vmatpush1.msra.mxu0 0.0
        %976 = vmatprep.subr.mxu0 0.0
        %977 = vmatpush1.msra.mxu0 0.0
        %978 = vmatprep.subr.mxu0 0.0
        %979 = vmatpush1.msra.mxu0 0.0
        %980 = vmatprep.subr.mxu0 0.0
        %981 = vmatpush1.msra.mxu0 0.0
        %982 = vmatprep.subr.mxu0 0.0
        %983 = vmatpush1.msra.mxu0 0.0
        %984 = vmatprep.subr.mxu0 0.0
        %985 = vmatpush1.msra.mxu0 0.0
        %986 = vmatprep.subr.mxu0 0.0
        %987 = vmatpush1.msra.mxu0 0.0
        %988 = vmatprep.subr.mxu0 0.0
        %989 = vmatpush1.msra.mxu0 0.0
        %990 = vmatprep.subr.mxu0 0.0
        %991 = vmatpush1.msra.mxu0 0.0
        %992 = vmatprep.subr.mxu0 0.0
        %993 = vmatpush1.msra.mxu0 0.0
        %994 = vmatprep.subr.mxu0 0.0
        %995 = vmatpush1.msra.mxu0 0.0
        %996 = vmatprep.subr.mxu0 0.0
        %997 = vmatpush1.msra.mxu0 0.0
        %998 = vmatprep.subr.mxu0 0.0
        %999 = vmatpush1.msra.mxu0 0.0
        %1000 = vmatprep.subr.mxu0 0.0
        %1001 = vmatpush1.msra.mxu0 0.0
        %1002 = vmatprep.subr.mxu0 0.0
        %1003 = vmatpush1.msra.mxu0 0.0
        %1004 = vmatprep.subr.mxu0 0.0
        %1005 = vmatpush1.msra.mxu0 0.0
        %1006 = vmatprep.subr.mxu0 0.0
        %1007 = vmatpush1.msra.mxu0 0.0
        %1008 = vmatprep.subr.mxu0 0.0
        %1009 = vmatpush1.msra.mxu0 0.0
        %1010 = vmatprep.subr.mxu0 0.0
        %1011 = vmatpush1.msra.mxu0 0.0
        %1012 = vmatprep.subr.mxu0 0.0
        %1013 = vmatpush1.msra.mxu0 0.0
        %1014 = vmatprep.mubr.f32.mxu0 0.0
        %1015 = vmatmul.mubr.f32.gmra.mrb[0].mxu0 %v948
        %v1016 = vpop.f32.mrb[0].mxu0
        %v1017 = vadd.f32 0.0, %v1016
        %v1018 = vpop.f32.mrb[0].mxu0
        %1019 = vdwg.mxu0
        %1021 = vrot.lane.b32.xlu0 %v687, 8
        %v1022 = vpop.permute.xlu0 %1021
        %1025 = vrot.lane.b32.xlu0 %v852, 16
        %v1026 = vpop.permute.xlu0 %1025
        %1029 = vrot.lane.b32.xlu0 %v1017, 24
        %v1030 = vpop.permute.xlu0 %1029
        %v1032 = vsel %vm363, %v522, %v1022
        %vm1033 = vcmask 130048
        %v1034 = vsel %vm1033, %v1032, %v1026
        %vm1035 = vcmask 195584
        %v1036 = vsel %vm1035, %v1034, %v1030
        %v1038 = vlaneseq
        %v1039 = vshrl.u32 %v1038, 7
        %v1040 = vsub.s32 0, %v1039
        %v1041 = vrot.slane %v279, %v1040
        %v1044 = vsel %vm286, %v1036, 0
        %1046 = vmatprep.subr.mxu0 0.0
        %1047 = vmatpush1.msra.mxu0 %v274
        %1048 = vmatprep.subr.mxu0 0.0
        %1049 = vmatpush1.msra.mxu0 %v275
        %1050 = vmatprep.subr.mxu0 0.0
        %1051 = vmatpush1.msra.mxu0 %v276
        %1052 = vmatprep.subr.mxu0 0.0
        %1053 = vmatpush1.msra.mxu0 %v277
        %1054 = vmatprep.subr.mxu0 0.0
        %1055 = vmatpush1.msra.mxu0 0.0
        %1056 = vmatprep.subr.mxu0 0.0
        %1057 = vmatpush1.msra.mxu0 0.0
        %1058 = vmatprep.subr.mxu0 0.0
        %1059 = vmatpush1.msra.mxu0 0.0
        %1060 = vmatprep.subr.mxu0 0.0
        %1061 = vmatpush1.msra.mxu0 0.0
        %1062 = vmatprep.subr.mxu0 0.0
        %1063 = vmatpush1.msra.mxu0 0.0
        %1064 = vmatprep.subr.mxu0 0.0
        %1065 = vmatpush1.msra.mxu0 0.0
        %1066 = vmatprep.subr.mxu0 0.0
        %1067 = vmatpush1.msra.mxu0 0.0
        %1068 = vmatprep.subr.mxu0 0.0
        %1069 = vmatpush1.msra.mxu0 0.0
        %1070 = vmatprep.subr.mxu0 0.0
        %1071 = vmatpush1.msra.mxu0 0.0
        %1072 = vmatprep.subr.mxu0 0.0
        %1073 = vmatpush1.msra.mxu0 0.0
        %1074 = vmatprep.subr.mxu0 0.0
        %1075 = vmatpush1.msra.mxu0 0.0
        %1076 = vmatprep.subr.mxu0 0.0
        %1077 = vmatpush1.msra.mxu0 0.0
        %1078 = vmatprep.subr.mxu0 0.0
        %1079 = vmatpush1.msra.mxu0 0.0
        %1080 = vmatprep.subr.mxu0 0.0
        %1081 = vmatpush1.msra.mxu0 0.0
        %1082 = vmatprep.subr.mxu0 0.0
        %1083 = vmatpush1.msra.mxu0 0.0
        %1084 = vmatprep.subr.mxu0 0.0
        %1085 = vmatpush1.msra.mxu0 0.0
        %1086 = vmatprep.subr.mxu0 0.0
        %1087 = vmatpush1.msra.mxu0 0.0
        %1088 = vmatprep.subr.mxu0 0.0
        %1089 = vmatpush1.msra.mxu0 0.0
        %1090 = vmatprep.subr.mxu0 0.0
        %1091 = vmatpush1.msra.mxu0 0.0
        %1092 = vmatprep.subr.mxu0 0.0
        %1093 = vmatpush1.msra.mxu0 0.0
        %1094 = vmatprep.subr.mxu0 0.0
        %1095 = vmatpush1.msra.mxu0 0.0
        %1096 = vmatprep.subr.mxu0 0.0
        %1097 = vmatpush1.msra.mxu0 0.0
        %1098 = vmatprep.subr.mxu0 0.0
        %1099 = vmatpush1.msra.mxu0 0.0
        %1100 = vmatprep.subr.mxu0 0.0
        %1101 = vmatpush1.msra.mxu0 0.0
        %1102 = vmatprep.subr.mxu0 0.0
        %1103 = vmatpush1.msra.mxu0 0.0
        %1104 = vmatprep.subr.mxu0 0.0
        %1105 = vmatpush1.msra.mxu0 0.0
        %1106 = vmatprep.subr.mxu0 0.0
        %1107 = vmatpush1.msra.mxu0 0.0
        %1108 = vmatprep.subr.mxu0 0.0
        %1109 = vmatpush1.msra.mxu0 0.0
        %1110 = vmatprep.mubr.f32.mxu0 0.0
        %1111 = vmatmul.mubr.f32.gmra.mrb[0].mxu0 %v1044
        %v1112 = vpop.f32.mrb[0].mxu0
        %v1113 = vadd.f32 %v1041, %v1112
        %v1114 = vpop.f32.mrb[0].mxu0
        %1115 = vdwg.mxu0
        %1116 = vst.msk [vmem:[%s268] sm:$0xff] %vm286, %v1113
        %s1117 = sand.u32 %s141, 1
        %s1118 = scalar_lea.sflag [#allocation4], %s1117
        %s1119 = sand.u32 %s141, 1
        %s1120 = smul.addr %s1119, 8
        %s1121 = scalar_lea.vmem [#allocation8], %s1120
        // Predicated region
        $region53: #{tpu_custom_call.1} parent=39 // pred_check
          %p1122 = pneg %p151
        $region54: #{tpu_custom_call.1} parent=39 // pred_check_branch
          %1124 = sbr.rel (%p1122) target = $region56
        $region55: #{tpu_custom_call.1} parent=39 // pred_region
          %s1126 = ssub.s32 128, 128
          %1127 = vsyncadd %s1118, %s1126
          %s1128 = smul.addr %s23, 128
          %s1129 = scalar_lea.hbm %s5, %s1128
          %s1131 = sshll.u32 %s1121, 4
          %s1132 = int_to_ptr.vmem [resolvable:$true] %s1131
          %1134 = dma.vmem_to_hbm [thread:$0]  %s1132, 128, %s1129, %s1118
        $region56: #{tpu_custom_call.1} parent=39 // pred_fallthru
          _
      $region40: #{tpu_custom_call.1} parent=5 // pred_fallthru
        _
      %p1135 = scmp.le.s32.totalorder 2, %s18
      // Predicated region
      $region57: #{tpu_custom_call.1} parent=5 // pred_check
        %p1136 = pneg %p1135
      $region58: #{tpu_custom_call.1} parent=5 // pred_check_branch
        %1138 = sbr.rel (%p1136) target = $region60
      $region59: #{tpu_custom_call.1} parent=5 // pred_region
        %s1139 = ssub.s32 %s18, 2
        // Predicated region
        $region61: #{tpu_custom_call.1} parent=59 // pred_check
          %p1140 = pneg %p157
        $region62: #{tpu_custom_call.1} parent=59 // pred_check_branch
          %1142 = sbr.rel (%p1140) target = $region64
        $region63: #{tpu_custom_call.1} parent=59 // pred_region
          %s1143 = sand.u32 %s142, 1
          %s1144 = scalar_lea.sflag [#allocation4], %s1143
          %s1145 = sand.u32 %s142, 1
          %s1146 = smul.addr %s1145, 8
          %s1147 = scalar_lea.vmem [#allocation8], %s1146
          %1148 = dma.done %s1144, 128
        $region64: #{tpu_custom_call.1} parent=59 // pred_fallthru
          _
      $region60: #{tpu_custom_call.1} parent=5 // pred_fallthru
        _
    $region6: #{tpu_custom_call.1} parent=1 // loop_footer
      %s22 = sadd.s32 1, %s18
    $region7: #{tpu_custom_call.1} parent=1 // loop_footer_branch
      %17 = sbr.rel target = $region3
    $region8: #{tpu_custom_call.1} parent=1 // loop_exit
      _
    %1149 = vsyncpa [#allocation3], 1
    %s1150 = scalar_lea.sflag [#allocation3], 1
    %1151 = vsyncpa %s1150, 1
    %1152 = vsyncpa [#allocation6], 1
    %1153 = vsyncpa [#allocation4], 1
    %s1154 = scalar_lea.sflag [#allocation4], 1
    %1155 = vsyncpa %s1154, 1

</llo_original>
